<compile_context>
chip_gen: v7x
topology: tpu7x:2x2x1
jax: 0.10.0
libtpu: 0.0.40
codegen_flags: <defaults>
</compile_context>

<pallas_src>
import jax
import jax.numpy as jnp
from jax.experimental import pallas as pl
from jax.experimental.pallas import tpu as pltpu

# ---------------- model hyper-parameters (small, synthetic) ----------------
B = 2            # batch (number of test waveforms)
T = 16           # number of feature frames
S = 128          # frame length (samples per frame)
F = 128          # number of "filterbank" features
H = 128          # hidden dim of the x-vector frame-level network
E = 128          # embedding dim
WAV_SCALE = float(2 ** 15 - 1)
EPS_STD = 1e-5
EPS_NORM = 1e-10


def _cosine_score_kernel(frames_ref, wsh_ref, b1_ref, wemb_ref, xe_ref,
                         score_ref):
    """Single grid step: all B utterances scored at once.

    frames_ref : (B*T, S) f32   waveform frames for the whole batch
    wsh_ref    : (S, H)   bf16  fused wfeat @ w1
    b1_ref     : (1, H)   f32
    wemb_ref   : (2H, E)  bf16  embedding projection after stats pooling
    xe_ref     : (B, E)   f32   pre-normalized enrollment embeddings
    score_ref  : (B, 128) f32   per-utterance score broadcast across lanes
    """
    # fused feature-extractor + frame-level layer: one bf16 MXU matmul,
    # f32 accumulation, for the whole batch.
    frames = frames_ref[...].astype(jnp.bfloat16)
    h = jnp.dot(frames, wsh_ref[...],
                preferred_element_type=jnp.float32)                  # (B*T, H)
    h = jnp.maximum(h + b1_ref[...], 0.0)

    # stats pooling per utterance.  T=16 is a multiple of 8, so this reshape
    # only regroups whole sublane tiles (no lane-crossing relayout).
    h3 = h.reshape(B, T, H)
    inv_t = 1.0 / T
    mean = jnp.sum(h3, axis=1) * inv_t                               # (B, H)
    d = h3 - mean[:, None, :]
    var = jnp.sum(d * d, axis=1) * inv_t
    std = jnp.sqrt(var + EPS_STD)                                    # (B, H)

    # [mean | std] lane-concat -> single (B, 2H) @ (2H, E) MXU matmul (K=256)
    stats = jnp.concatenate([mean, std], axis=-1).astype(jnp.bfloat16)
    x_t = jnp.dot(stats, wemb_ref[...],
                  preferred_element_type=jnp.float32)                # (B, E)

    # l2_norm of the test embedding: x / (||x|| + eps); x_e is already
    # normalized once at enrollment time in the wrapper.
    norm = jnp.sqrt(jnp.sum(x_t * x_t, axis=-1, keepdims=True))
    x_t = x_t / (norm + EPS_NORM)

    score = jnp.sum(xe_ref[...] * x_t, axis=-1, keepdims=True)       # (B, 1)
    score_ref[...] = jnp.broadcast_to(score, score_ref.shape)


def prepare_scoring_params(wfeat, w1, b1, wemb, x_e):
    """One-time (model-load / enrollment-time) precomputation, off the hot path."""
    # Fuse feature projection + first frame layer (no nonlinearity between).
    w_sh = jnp.dot(wfeat, w1,
                   preferred_element_type=jnp.float32).astype(jnp.bfloat16)
    wemb_bf = wemb.astype(jnp.bfloat16)
    xe_n = x_e / (jnp.linalg.norm(x_e, axis=-1, keepdims=True) + EPS_NORM)
    return w_sh, b1.astype(jnp.float32), wemb_bf, xe_n.astype(jnp.float32)


@jax.jit
def cosine_scoring_forward(s_t, w_sh, b1, wemb_bf, xe_n):
    """s_t: (B, N) waveform, N = T*S. Returns (B,) cosine scores."""
    b, n = s_t.shape
    assert n == T * S and b == B
    # sigma=0 and no wavegan: s/wav_scale then *wav_scale cancels exactly.
    frames = s_t.reshape(b * T, S)          # contiguous reshape: free under jit

    out = pl.pallas_call(
        _cosine_score_kernel,
        out_shape=jax.ShapeDtypeStruct((b, 128), jnp.float32),
        grid=(1,),
        in_specs=[
            pl.BlockSpec((b * T, S), lambda i: (0, 0)),      # frames (whole batch)
            pl.BlockSpec((S, H), lambda i: (0, 0)),           # fused weight
            pl.BlockSpec((1, H), lambda i: (0, 0)),            # bias
            pl.BlockSpec((2 * H, E), lambda i: (0, 0)),        # wemb (bf16)
            pl.BlockSpec((b, E), lambda i: (0, 0)),            # normalized x_e
        ],
        out_specs=pl.BlockSpec((b, 128), lambda i: (0, 0)),    # lane-dense scores
        compiler_params=pltpu.CompilerParams(
            dimension_semantics=("arbitrary",)),
    )(frames, w_sh, b1, wemb_bf, xe_n)
    return out[:, 0]


def _reference_forward(s_t, wfeat, w1, b1, wemb, x_e):
    """Pure-JAX reference of the same synthetic model (same bf16 rounding)."""
    s = (s_t / WAV_SCALE) * WAV_SCALE
    frames = s.reshape(s.shape[0], T, S).astype(jnp.bfloat16).astype(jnp.float32)
    w_sh = (wfeat @ w1).astype(jnp.bfloat16).astype(jnp.float32)
    h = jnp.maximum(jnp.einsum("bts,sh->bth", frames, w_sh) + b1[0], 0.0)
    mean = h.mean(axis=1)
    var = ((h - mean[:, None, :]) ** 2).mean(axis=1)
    std = jnp.sqrt(var + EPS_STD)
    stats = jnp.concatenate([mean, std], axis=-1)
    stats_bf = stats.astype(jnp.bfloat16).astype(jnp.float32)
    wemb_bf = wemb.astype(jnp.bfloat16).astype(jnp.float32)
    x_t = stats_bf @ wemb_bf
    x_t = x_t / (jnp.linalg.norm(x_t, axis=-1, keepdims=True) + EPS_NORM)
    x_en = x_e / (jnp.linalg.norm(x_e, axis=-1, keepdims=True) + EPS_NORM)
    return jnp.sum(x_en * x_t, axis=-1)


if __name__ == "__main__":
    key = jax.random.PRNGKey(0)
    k_wav, k_wf, k_w1, k_b1, k_we, k_xe = jax.random.split(key, 6)

    # deterministic synthetic inputs / parameters
    s_t = jax.random.normal(k_wav, (B, T * S), dtype=jnp.float32) * 1000.0
    wfeat = jax.random.normal(k_wf, (S, F), dtype=jnp.float32) * 0.05
    w1 = jax.random.normal(k_w1, (F, H), dtype=jnp.float32) * 0.05
    b1 = jax.random.normal(k_b1, (1, H), dtype=jnp.float32) * 0.01
    wemb = jax.random.normal(k_we, (2 * H, E), dtype=jnp.float32) * 0.05
    x_e = jax.random.normal(k_xe, (B, E), dtype=jnp.float32)   # enrollment

    # one-time prep (weight fusion, bf16 casts, enrollment normalization)
    params = prepare_scoring_params(wfeat, w1, b1, wemb, x_e)

    score = cosine_scoring_forward(s_t, *params)
    jax.block_until_ready(score)

    ref = _reference_forward(s_t, wfeat, w1, b1, wemb, x_e)
    assert score.shape == (B,)
    assert jnp.allclose(score, ref, atol=2e-3, rtol=2e-3), (score, ref)

    # TODO(synk): wave_gan_defender / calibrator / vad_t are external modules
    # (None in the default config) and are not modeled here.
    print("KERNEL_OK")
</pallas_src>

<mosaic_0001>
module attributes {stable_mosaic.version = 11 : i64} {
  func.func @_cosine_score_kernel(%arg0: i32, %arg1: memref<32x128xf32, #tpu.memory_space<vmem>>, %arg2: memref<128x128xbf16, #tpu.memory_space<vmem>>, %arg3: memref<1x128xf32, #tpu.memory_space<vmem>>, %arg4: memref<256x128xbf16, #tpu.memory_space<vmem>>, %arg5: memref<2x128xf32, #tpu.memory_space<vmem>>, %arg6: memref<2x128xf32, #tpu.memory_space<vmem>>) attributes {dimension_semantics = [#tpu.dimension_semantics<arbitrary>], iteration_bounds = array<i64: 1>, scalar_prefetch = 0 : i64, scratch_operands = 0 : i64, tpu.core_type = #tpu.core_type<tc>, window_params = [{pipeline_mode = #tpu.pipeline_mode<synchronous>, transform_indices = @transform_0, window_bounds = array<i64: 32, 128>}, {pipeline_mode = #tpu.pipeline_mode<synchronous>, transform_indices = @transform_1, window_bounds = array<i64: 128, 128>}, {pipeline_mode = #tpu.pipeline_mode<synchronous>, transform_indices = @transform_2, window_bounds = array<i64: 1, 128>}, {pipeline_mode = #tpu.pipeline_mode<synchronous>, transform_indices = @transform_3, window_bounds = array<i64: 256, 128>}, {pipeline_mode = #tpu.pipeline_mode<synchronous>, transform_indices = @transform_4, window_bounds = array<i64: 2, 128>}, {pipeline_mode = #tpu.pipeline_mode<synchronous>, transform_indices = @transform_5, window_bounds = array<i64: 2, 128>}]} {
    %c0 = arith.constant 0 : index
    %c0_0 = arith.constant 0 : index
    %0 = vector.load %arg1[%c0, %c0_0] : memref<32x128xf32, #tpu.memory_space<vmem>>, vector<32x128xf32>
    %1 = arith.truncf %0 : vector<32x128xf32> to vector<32x128xbf16>
    %c0_1 = arith.constant 0 : index
    %c0_2 = arith.constant 0 : index
    %2 = vector.load %arg2[%c0_1, %c0_2] : memref<128x128xbf16, #tpu.memory_space<vmem>>, vector<128x128xbf16>
    %cst = arith.constant dense<0.000000e+00> : vector<32x128xf32>
    %3 = tpu.matmul %1, %2, %cst {dimension_numbers = #tpu.dot_dimension_numbers<[1], [0], [0], [1], [0, 0, 1, 1], [], []>} : vector<32x128xbf16>, vector<128x128xbf16>, vector<32x128xf32> -> vector<32x128xf32>
    %c0_3 = arith.constant 0 : index
    %c0_4 = arith.constant 0 : index
    %4 = vector.load %arg3[%c0_3, %c0_4] : memref<1x128xf32, #tpu.memory_space<vmem>>, vector<1x128xf32>
    %5 = vector.broadcast %4 : vector<1x128xf32> to vector<32x128xf32>
    %6 = arith.addf %3, %5 : vector<32x128xf32>
    %cst_5 = arith.constant 0.000000e+00 : f32
    %7 = vector.broadcast %cst_5 : f32 to vector<32x128xf32>
    %8 = arith.maximumf %6, %7 : vector<32x128xf32>
    %9 = vector.shape_cast %8 : vector<32x128xf32> to vector<2x16x128xf32>
    %cst_6 = arith.constant dense<0.000000e+00> : vector<2x128xf32>
    %10 = vector.multi_reduction <add>, %9, %cst_6 [1] : vector<2x16x128xf32> to vector<2x128xf32>
    %cst_7 = arith.constant 6.250000e-02 : f32
    %11 = vector.broadcast %cst_7 : f32 to vector<2x128xf32>
    %12 = arith.mulf %10, %11 : vector<2x128xf32>
    %13 = vector.shape_cast %12 : vector<2x128xf32> to vector<2x1x128xf32>
    %14 = vector.broadcast %13 : vector<2x1x128xf32> to vector<2x16x128xf32>
    %15 = arith.subf %9, %14 : vector<2x16x128xf32>
    %16 = arith.mulf %15, %15 : vector<2x16x128xf32>
    %cst_8 = arith.constant dense<0.000000e+00> : vector<2x128xf32>
    %17 = vector.multi_reduction <add>, %16, %cst_8 [1] : vector<2x16x128xf32> to vector<2x128xf32>
    %cst_9 = arith.constant 6.250000e-02 : f32
    %18 = vector.broadcast %cst_9 : f32 to vector<2x128xf32>
    %19 = arith.mulf %17, %18 : vector<2x128xf32>
    %cst_10 = arith.constant 9.99999974E-6 : f32
    %20 = vector.broadcast %cst_10 : f32 to vector<2x128xf32>
    %21 = arith.addf %19, %20 : vector<2x128xf32>
    %22 = math.sqrt %21 : vector<2x128xf32>
    %23 = tpu.concatenate %12, %22 in 1 : vector<2x128xf32>, vector<2x128xf32> -> vector<2x256xf32>
    %24 = arith.truncf %23 : vector<2x256xf32> to vector<2x256xbf16>
    %c0_11 = arith.constant 0 : index
    %c0_12 = arith.constant 0 : index
    %25 = vector.load %arg4[%c0_11, %c0_12] : memref<256x128xbf16, #tpu.memory_space<vmem>>, vector<256x128xbf16>
    %cst_13 = arith.constant dense<0.000000e+00> : vector<2x128xf32>
    %26 = tpu.matmul %24, %25, %cst_13 {dimension_numbers = #tpu.dot_dimension_numbers<[1], [0], [0], [1], [0, 0, 1, 1], [], []>} : vector<2x256xbf16>, vector<256x128xbf16>, vector<2x128xf32> -> vector<2x128xf32>
    %27 = arith.mulf %26, %26 : vector<2x128xf32>
    %cst_14 = arith.constant dense<0.000000e+00> : vector<2xf32>
    %28 = vector.multi_reduction <add>, %27, %cst_14 [1] : vector<2x128xf32> to vector<2xf32>
    %29 = vector.shape_cast %28 : vector<2xf32> to vector<2x1xf32>
    %30 = math.sqrt %29 : vector<2x1xf32>
    %cst_15 = arith.constant 1.000000e-10 : f32
    %31 = vector.broadcast %cst_15 : f32 to vector<2x1xf32>
    %32 = arith.addf %30, %31 : vector<2x1xf32>
    %33 = vector.broadcast %32 : vector<2x1xf32> to vector<2x128xf32>
    %34 = arith.divf %26, %33 : vector<2x128xf32>
    %c0_16 = arith.constant 0 : index
    %c0_17 = arith.constant 0 : index
    %35 = vector.load %arg5[%c0_16, %c0_17] : memref<2x128xf32, #tpu.memory_space<vmem>>, vector<2x128xf32>
    %36 = arith.mulf %35, %34 : vector<2x128xf32>
    %cst_18 = arith.constant dense<0.000000e+00> : vector<2xf32>
    %37 = vector.multi_reduction <add>, %36, %cst_18 [1] : vector<2x128xf32> to vector<2xf32>
    %38 = vector.shape_cast %37 : vector<2xf32> to vector<2x1xf32>
    %39 = vector.shape_cast %38 : vector<2x1xf32> to vector<2x1xf32>
    %40 = vector.broadcast %39 : vector<2x1xf32> to vector<2x128xf32>
    %c0_19 = arith.constant 0 : index
    %c0_20 = arith.constant 0 : index
    %41 = vector.load %arg6[%c0_19, %c0_20] : memref<2x128xf32, #tpu.memory_space<vmem>>, vector<2x128xf32>
    tpu.vector_store %arg6[%c0_19, %c0_20], %40 {strides = array<i32>} : memref<2x128xf32, #tpu.memory_space<vmem>>, vector<2x128xf32>,
    return
  }
  func.func @transform_0(%arg0: i32) -> (i32, i32) {
    %c0_i32 = arith.constant 0 : i32
    %c0_i32_0 = arith.constant 0 : i32
    %c0_i32_1 = arith.constant 0 : i32
    return %c0_i32, %c0_i32_0 : i32, i32
  }
  func.func @transform_1(%arg0: i32) -> (i32, i32) {
    %c0_i32 = arith.constant 0 : i32
    %c0_i32_0 = arith.constant 0 : i32
    %c0_i32_1 = arith.constant 0 : i32
    return %c0_i32, %c0_i32_0 : i32, i32
  }
  func.func @transform_2(%arg0: i32) -> (i32, i32) {
    %c0_i32 = arith.constant 0 : i32
    %c0_i32_0 = arith.constant 0 : i32
    %c0_i32_1 = arith.constant 0 : i32
    return %c0_i32, %c0_i32_0 : i32, i32
  }
  func.func @transform_3(%arg0: i32) -> (i32, i32) {
    %c0_i32 = arith.constant 0 : i32
    %c0_i32_0 = arith.constant 0 : i32
    %c0_i32_1 = arith.constant 0 : i32
    return %c0_i32, %c0_i32_0 : i32, i32
  }
  func.func @transform_4(%arg0: i32) -> (i32, i32) {
    %c0_i32 = arith.constant 0 : i32
    %c0_i32_0 = arith.constant 0 : i32
    %c0_i32_1 = arith.constant 0 : i32
    return %c0_i32, %c0_i32_0 : i32, i32
  }
  func.func @transform_5(%arg0: i32) -> (i32, i32) {
    %c0_i32 = arith.constant 0 : i32
    %c0_i32_0 = arith.constant 0 : i32
    %c0_i32_1 = arith.constant 0 : i32
    return %c0_i32, %c0_i32_0 : i32, i32
  }
}

</mosaic_0001>

<llo_original>
// kernel: cosine_scoring_forward.1
$region0: #{cosine_scoring_forward.1}
  #allocation0 [shape = 'u32[]', space=smem, size = 0x4, offset = 0x4, fixed_abs, tag = 'smem constant byte address 0x4 - core index']
  #allocation1 [shape = 'u32[144,128]{1,0:T(1,128)}', space=vmem, size = 0x12000, scoped, tag = 'internal scratch']
  %s0 = inlined_call_operand.vmem [shape: f32[32,128], index: 0, kind: input, shape index: {}]
  %s1 = inlined_call_operand.vmem [shape: bf16[128,128], index: 1, kind: input, shape index: {}]
  %s2 = inlined_call_operand.vmem [shape: f32[1,128], index: 2, kind: input, shape index: {}]
  %s3 = inlined_call_operand.hbm [shape: bf16[256,128], index: 3, kind: input, shape index: {}]
  %s4 = inlined_call_operand.vmem [shape: f32[2,128], index: 4, kind: input, shape index: {}]
  %s5 = inlined_call_operand.vmem [shape: f32[2,128], index: 5, kind: output, shape index: {}]
  %s6 = sld [smem:[#allocation0]]
  $region34: #{cosine_scoring_forward.1} parent=0
    _
  %s8 = ssub.s32 1, %s6
  %s9 = scalar_select 0, %s8, %s6
  $region1: #{cosine_scoring_forward.1} parent=0
    #allocation2 [shape = 'u8[65536]{0}', space=vmem, size = 0x10000, scoped, tag = 'input window, operand 3, single buffered']
    #allocation3 [shape = 's32[1]{0}', space=sflag, size = 0x4, scoped, tag = 'scoped memory for cosine_scoring_forward.1']
    %10 = vsyncpa [#allocation3], 0
    // Predicated region
    $region2: #{cosine_scoring_forward.1} parent=1 // pred_check
      _
    $region3: #{cosine_scoring_forward.1} parent=1 // pred_check_branch
      %12 = sbr.rel (0) target = $region5
    $region4: #{cosine_scoring_forward.1} parent=1 // pred_region
      _
    $region5: #{cosine_scoring_forward.1} parent=1 // pred_fallthru
      _
    // Predicated region
    $region6: #{cosine_scoring_forward.1} parent=1 // pred_check
      _
    $region7: #{cosine_scoring_forward.1} parent=1 // pred_check_branch
      %14 = sbr.rel (0) target = $region9
    $region8: #{cosine_scoring_forward.1} parent=1 // pred_region
      _
    $region9: #{cosine_scoring_forward.1} parent=1 // pred_fallthru
      _
    // Predicated region
    $region10: #{cosine_scoring_forward.1} parent=1 // pred_check
      _
    $region11: #{cosine_scoring_forward.1} parent=1 // pred_check_branch
      %16 = sbr.rel (0) target = $region13
    $region12: #{cosine_scoring_forward.1} parent=1 // pred_region
      _
    $region13: #{cosine_scoring_forward.1} parent=1 // pred_fallthru
      _
    // Predicated region
    $region14: #{cosine_scoring_forward.1} parent=1 // pred_check
      _
    $region15: #{cosine_scoring_forward.1} parent=1 // pred_check_branch
      %18 = sbr.rel (0) target = $region17
    $region16: #{cosine_scoring_forward.1} parent=1 // pred_region
      %s20 = ssub.s32 2048, 2048
      %21 = vsyncadd [#allocation3], %s20
      %s22 = sshll.u32 [#allocation2], 4
      %s23 = int_to_ptr.vmem [resolvable:$true] %s22
      %28 = dma.hbm_to_vmem [thread:$0]  %s3, 2048, %s23, [#allocation3], 64, 64, 4
    $region17: #{cosine_scoring_forward.1} parent=1 // pred_fallthru
      _
    // Predicated region
    $region18: #{cosine_scoring_forward.1} parent=1 // pred_check
      _
    $region19: #{cosine_scoring_forward.1} parent=1 // pred_check_branch
      %30 = sbr.rel (0) target = $region21
    $region20: #{cosine_scoring_forward.1} parent=1 // pred_region
      _
    $region21: #{cosine_scoring_forward.1} parent=1 // pred_fallthru
      _
    // Predicated region
    $region22: #{cosine_scoring_forward.1} parent=1 // pred_check
      _
    $region23: #{cosine_scoring_forward.1} parent=1 // pred_check_branch
      %32 = sbr.rel (0) target = $region25
    $region24: #{cosine_scoring_forward.1} parent=1 // pred_region
      %33 = dma.done [#allocation3], 2048
    $region25: #{cosine_scoring_forward.1} parent=1 // pred_fallthru
      _
    %v35 = vld [vmem:[%s0] sm:$0xff]
    %v36 = vld [vmem:[%s0 + $0x8] sm:$0xff]
    %v37 = vld [vmem:[%s0 + $0x10] sm:$0xff]
    %v38 = vld [vmem:[%s0 + $0x18] sm:$0xff]
    %v39 = vpack.c.bf16 %v36, %v35
    %v40 = vpack.c.bf16 %v38, %v37
    %v41 = vld [vmem:[%s1] sm:$0xf]
    %v42 = vld [vmem:[%s1 + $0x4] sm:$0xf]
    %v43 = vld [vmem:[%s1 + $0x8] sm:$0xf]
    %v44 = vld [vmem:[%s1 + $0xc] sm:$0xf]
    %v45 = vld [vmem:[%s1 + $0x10] sm:$0xf]
    %v46 = vld [vmem:[%s1 + $0x14] sm:$0xf]
    %v47 = vld [vmem:[%s1 + $0x18] sm:$0xf]
    %v48 = vld [vmem:[%s1 + $0x1c] sm:$0xf]
    %v49 = vld [vmem:[%s1 + $0x20] sm:$0xf]
    %v50 = vld [vmem:[%s1 + $0x24] sm:$0xf]
    %v51 = vld [vmem:[%s1 + $0x28] sm:$0xf]
    %v52 = vld [vmem:[%s1 + $0x2c] sm:$0xf]
    %v53 = vld [vmem:[%s1 + $0x30] sm:$0xf]
    %v54 = vld [vmem:[%s1 + $0x34] sm:$0xf]
    %v55 = vld [vmem:[%s1 + $0x38] sm:$0xf]
    %v56 = vld [vmem:[%s1 + $0x3c] sm:$0xf]
    %v57 = vld [vmem:[%s2] sm:$0x1]
    %v59 = vlaneseq
    %v60 = vshrl.u32 %v59, 7
    %v61 = vsub.s32 0, %v60
    %v62 = vrot.slane %v57, %v61
    %v80 = vunpack.c.l.b16 %v41
    %v81 = vunpack.c.l.b16 %v42
    %v82 = vunpack.c.l.b16 %v43
    %v83 = vunpack.c.l.b16 %v44
    %v84 = vunpack.c.l.b16 %v45
    %v85 = vunpack.c.l.b16 %v46
    %v86 = vunpack.c.l.b16 %v47
    %v87 = vunpack.c.l.b16 %v48
    %v88 = vunpack.c.l.b16 %v49
    %v89 = vunpack.c.l.b16 %v50
    %v90 = vunpack.c.l.b16 %v51
    %v91 = vunpack.c.l.b16 %v52
    %v92 = vunpack.c.l.b16 %v53
    %v93 = vunpack.c.l.b16 %v54
    %v94 = vunpack.c.l.b16 %v55
    %v95 = vunpack.c.l.b16 %v56
    %v96 = vpack.c.b16 %v81, %v80
    %v97 = vpack.c.b16 %v83, %v82
    %v98 = vpack.c.b16 %v85, %v84
    %v99 = vpack.c.b16 %v87, %v86
    %v100 = vpack.c.b16 %v89, %v88
    %v101 = vpack.c.b16 %v91, %v90
    %v102 = vpack.c.b16 %v93, %v92
    %v103 = vpack.c.b16 %v95, %v94
    %112 = vmatprep.subr.bf16.mxu0 0
    %113 = vmatpush1.bf16.msra.mxu0 %v96
    %114 = vmatprep.subr.bf16.mxu0 0
    %115 = vmatpush1.bf16.msra.mxu0 %v97
    %116 = vmatprep.subr.bf16.mxu0 0
    %117 = vmatpush1.bf16.msra.mxu0 %v98
    %118 = vmatprep.subr.bf16.mxu0 0
    %119 = vmatpush1.bf16.msra.mxu0 %v99
    %120 = vmatprep.subr.bf16.mxu0 0
    %121 = vmatpush1.bf16.msra.mxu0 %v100
    %122 = vmatprep.subr.bf16.mxu0 0
    %123 = vmatpush1.bf16.msra.mxu0 %v101
    %124 = vmatprep.subr.bf16.mxu0 0
    %125 = vmatpush1.bf16.msra.mxu0 %v102
    %126 = vmatprep.subr.bf16.mxu0 0
    %127 = vmatpush1.bf16.msra.mxu0 %v103
    %128 = vmatprep.subr.bf16.mxu0 0
    %129 = vmatpush1.bf16.msra.mxu0 0
    %130 = vmatprep.subr.bf16.mxu0 0
    %131 = vmatpush1.bf16.msra.mxu0 0
    %132 = vmatprep.subr.bf16.mxu0 0
    %133 = vmatpush1.bf16.msra.mxu0 0
    %134 = vmatprep.subr.bf16.mxu0 0
    %135 = vmatpush1.bf16.msra.mxu0 0
    %136 = vmatprep.subr.bf16.mxu0 0
    %137 = vmatpush1.bf16.msra.mxu0 0
    %138 = vmatprep.subr.bf16.mxu0 0
    %139 = vmatpush1.bf16.msra.mxu0 0
    %140 = vmatprep.subr.bf16.mxu0 0
    %141 = vmatpush1.bf16.msra.mxu0 0
    %142 = vmatprep.subr.bf16.mxu0 0
    %143 = vmatpush1.bf16.msra.mxu0 0
    %144 = vmatprep.mubr.bf16.mxu0 0
    %145 = vmatmul.mubr.bf16.gmra.mrb[0].mxu0 %v39
    %v146 = vpop.f32.mrb[0].mxu0
    %v147 = vadd.f32 %v62, %v146
    %v148 = vpop.f32.mrb[0].mxu0
    %v149 = vpop.f32.mrb[0].mxu0
    %v150 = vadd.f32 %v62, %v149
    %v151 = vpop.f32.mrb[0].mxu0
    %152 = vmatprep.mubr.bf16.mxu0 0
    %153 = vmatmul.mubr.bf16.gmra.mrb[0].mxu0 %v40
    %v154 = vpop.f32.mrb[0].mxu0
    %v155 = vadd.f32 %v62, %v154
    %v156 = vpop.f32.mrb[0].mxu0
    %v157 = vpop.f32.mrb[0].mxu0
    %v158 = vadd.f32 %v62, %v157
    %v159 = vpop.f32.mrb[0].mxu0
    %160 = vdwg.mxu0
    %v161 = vmax.f32 %v147, 0.0
    %v162 = vmax.f32 %v150, 0.0
    %v163 = vmax.f32 %v155, 0.0
    %v164 = vmax.f32 %v158, 0.0
    %v165 = vadd.f32 %v161, %v162
    %v166 = vrot.slane %v165, 4
    %v167 = vadd.f32 %v165, %v166
    %v168 = vrot.slane %v167, 2
    %v169 = vadd.f32 %v167, %v168
    %v170 = vrot.slane %v169, 1
    %v171 = vadd.f32 %v169, %v170
    %v172 = vadd.f32 %v163, %v164
    %v173 = vrot.slane %v172, 4
    %v174 = vadd.f32 %v172, %v173
    %v175 = vrot.slane %v174, 2
    %v176 = vadd.f32 %v174, %v175
    %v177 = vrot.slane %v176, 1
    %v178 = vadd.f32 %v176, %v177
    %v179 = vmul.f32 %v171, 0.0625
    %v180 = vmul.f32 %v178, 0.0625
    %v181 = vsub.f32 %v161, %v179
    %v182 = vsub.f32 %v162, %v179
    %v183 = vsub.f32 %v163, %v180
    %v184 = vsub.f32 %v164, %v180
    %v185 = vmul.f32 %v181, %v181
    %v186 = vmul.f32 %v182, %v182
    %v187 = vmul.f32 %v183, %v183
    %v188 = vmul.f32 %v184, %v184
    %v189 = vadd.f32 %v185, %v186
    %v190 = vrot.slane %v189, 4
    %v191 = vadd.f32 %v189, %v190
    %v192 = vrot.slane %v191, 2
    %v193 = vadd.f32 %v191, %v192
    %v194 = vrot.slane %v193, 1
    %v195 = vadd.f32 %v193, %v194
    %v196 = vadd.f32 %v187, %v188
    %v197 = vrot.slane %v196, 4
    %v198 = vadd.f32 %v196, %v197
    %v199 = vrot.slane %v198, 2
    %v200 = vadd.f32 %v198, %v199
    %v201 = vrot.slane %v200, 1
    %v202 = vadd.f32 %v200, %v201
    %v203 = vmul.f32 %v195, 0.0625
    %v204 = vmul.f32 %v202, 0.0625
    %v205 = vadd.f32 %v203, 1e-05
    %v206 = vadd.f32 %v204, 1e-05
    %v207 = vrsqrt.pop %v205
    %v208 = vmul.f32 %v205, %v207
    %vm209 = vcmp.eq.f32.partialorder %v205, inf
    %v210 = vsel %vm209, %v205, %v208
    %vm211 = vcmp.eq.f32.partialorder %v205, 0.0
    %v212 = vand.u32 %v205, 2147483648
    %v213 = vsel %vm211, %v212, %v210
    %v214 = vrsqrt.pop %v206
    %v215 = vmul.f32 %v206, %v214
    %vm216 = vcmp.eq.f32.partialorder %v206, inf
    %v217 = vsel %vm216, %v206, %v215
    %vm218 = vcmp.eq.f32.partialorder %v206, 0.0
    %v219 = vand.u32 %v206, 2147483648
    %v220 = vsel %vm218, %v219, %v217
    %vm223 = vcmask 1041409
    %v224 = vsel %vm223, %v180, %v179
    %v228 = vsel %vm223, %v220, %v213
    %v230 = vpack.c.bf16 %v224, %v224
    %v231 = vpack.c.bf16 %v228, %v228
    %v232 = vld [vmem:[#allocation2] sm:$0xf]
    %v233 = vld [vmem:[#allocation2 + $0x4] sm:$0xf]
    %v234 = vld [vmem:[#allocation2 + $0x8] sm:$0xf]
    %v235 = vld [vmem:[#allocation2 + $0xc] sm:$0xf]
    %v236 = vld [vmem:[#allocation2 + $0x10] sm:$0xf]
    %v237 = vld [vmem:[#allocation2 + $0x14] sm:$0xf]
    %v238 = vld [vmem:[#allocation2 + $0x18] sm:$0xf]
    %v239 = vld [vmem:[#allocation2 + $0x1c] sm:$0xf]
    %v240 = vld [vmem:[#allocation2 + $0x20] sm:$0xf]
    %v241 = vld [vmem:[#allocation2 + $0x24] sm:$0xf]
    %v242 = vld [vmem:[#allocation2 + $0x28] sm:$0xf]
    %v243 = vld [vmem:[#allocation2 + $0x2c] sm:$0xf]
    %v244 = vld [vmem:[#allocation2 + $0x30] sm:$0xf]
    %v245 = vld [vmem:[#allocation2 + $0x34] sm:$0xf]
    %v246 = vld [vmem:[#allocation2 + $0x38] sm:$0xf]
    %v247 = vld [vmem:[#allocation2 + $0x3c] sm:$0xf]
    %v248 = vld [vmem:[#allocation2 + $0x40] sm:$0xf]
    %v249 = vld [vmem:[#allocation2 + $0x44] sm:$0xf]
    %v250 = vld [vmem:[#allocation2 + $0x48] sm:$0xf]
    %v251 = vld [vmem:[#allocation2 + $0x4c] sm:$0xf]
    %v252 = vld [vmem:[#allocation2 + $0x50] sm:$0xf]
    %v253 = vld [vmem:[#allocation2 + $0x54] sm:$0xf]
    %v254 = vld [vmem:[#allocation2 + $0x58] sm:$0xf]
    %v255 = vld [vmem:[#allocation2 + $0x5c] sm:$0xf]
    %v256 = vld [vmem:[#allocation2 + $0x60] sm:$0xf]
    %v257 = vld [vmem:[#allocation2 + $0x64] sm:$0xf]
    %v258 = vld [vmem:[#allocation2 + $0x68] sm:$0xf]
    %v259 = vld [vmem:[#allocation2 + $0x6c] sm:$0xf]
    %v260 = vld [vmem:[#allocation2 + $0x70] sm:$0xf]
    %v261 = vld [vmem:[#allocation2 + $0x74] sm:$0xf]
    %v262 = vld [vmem:[#allocation2 + $0x78] sm:$0xf]
    %v263 = vld [vmem:[#allocation2 + $0x7c] sm:$0xf]
    %v296 = vunpack.c.l.b16 %v232
    %v297 = vunpack.c.l.b16 %v233
    %v298 = vunpack.c.l.b16 %v234
    %v299 = vunpack.c.l.b16 %v235
    %v300 = vunpack.c.l.b16 %v236
    %v301 = vunpack.c.l.b16 %v237
    %v302 = vunpack.c.l.b16 %v238
    %v303 = vunpack.c.l.b16 %v239
    %v304 = vunpack.c.l.b16 %v240
    %v305 = vunpack.c.l.b16 %v241
    %v306 = vunpack.c.l.b16 %v242
    %v307 = vunpack.c.l.b16 %v243
    %v308 = vunpack.c.l.b16 %v244
    %v309 = vunpack.c.l.b16 %v245
    %v310 = vunpack.c.l.b16 %v246
    %v311 = vunpack.c.l.b16 %v247
    %v312 = vunpack.c.l.b16 %v248
    %v313 = vunpack.c.l.b16 %v249
    %v314 = vunpack.c.l.b16 %v250
    %v315 = vunpack.c.l.b16 %v251
    %v316 = vunpack.c.l.b16 %v252
    %v317 = vunpack.c.l.b16 %v253
    %v318 = vunpack.c.l.b16 %v254
    %v319 = vunpack.c.l.b16 %v255
    %v320 = vunpack.c.l.b16 %v256
    %v321 = vunpack.c.l.b16 %v257
    %v322 = vunpack.c.l.b16 %v258
    %v323 = vunpack.c.l.b16 %v259
    %v324 = vunpack.c.l.b16 %v260
    %v325 = vunpack.c.l.b16 %v261
    %v326 = vunpack.c.l.b16 %v262
    %v327 = vunpack.c.l.b16 %v263
    %v328 = vpack.c.b16 %v297, %v296
    %v329 = vpack.c.b16 %v299, %v298
    %v330 = vpack.c.b16 %v301, %v300
    %v331 = vpack.c.b16 %v303, %v302
    %v332 = vpack.c.b16 %v305, %v304
    %v333 = vpack.c.b16 %v307, %v306
    %v334 = vpack.c.b16 %v309, %v308
    %v335 = vpack.c.b16 %v311, %v310
    %v336 = vpack.c.b16 %v313, %v312
    %v337 = vpack.c.b16 %v315, %v314
    %v338 = vpack.c.b16 %v317, %v316
    %v339 = vpack.c.b16 %v319, %v318
    %v340 = vpack.c.b16 %v321, %v320
    %v341 = vpack.c.b16 %v323, %v322
    %v342 = vpack.c.b16 %v325, %v324
    %v343 = vpack.c.b16 %v327, %v326
    %360 = vmatprep.subr.bf16.mxu0 0
    %361 = vmatpush1.bf16.msra.mxu0 %v328
    %362 = vmatprep.subr.bf16.mxu0 0
    %363 = vmatpush1.bf16.msra.mxu0 %v329
    %364 = vmatprep.subr.bf16.mxu0 0
    %365 = vmatpush1.bf16.msra.mxu0 %v330
    %366 = vmatprep.subr.bf16.mxu0 0
    %367 = vmatpush1.bf16.msra.mxu0 %v331
    %368 = vmatprep.subr.bf16.mxu0 0
    %369 = vmatpush1.bf16.msra.mxu0 %v332
    %370 = vmatprep.subr.bf16.mxu0 0
    %371 = vmatpush1.bf16.msra.mxu0 %v333
    %372 = vmatprep.subr.bf16.mxu0 0
    %373 = vmatpush1.bf16.msra.mxu0 %v334
    %374 = vmatprep.subr.bf16.mxu0 0
    %375 = vmatpush1.bf16.msra.mxu0 %v335
    %376 = vmatprep.subr.bf16.mxu0 0
    %377 = vmatpush1.bf16.msra.mxu0 %v336
    %378 = vmatprep.subr.bf16.mxu0 0
    %379 = vmatpush1.bf16.msra.mxu0 %v337
    %380 = vmatprep.subr.bf16.mxu0 0
    %381 = vmatpush1.bf16.msra.mxu0 %v338
    %382 = vmatprep.subr.bf16.mxu0 0
    %383 = vmatpush1.bf16.msra.mxu0 %v339
    %384 = vmatprep.subr.bf16.mxu0 0
    %385 = vmatpush1.bf16.msra.mxu0 %v340
    %386 = vmatprep.subr.bf16.mxu0 0
    %387 = vmatpush1.bf16.msra.mxu0 %v341
    %388 = vmatprep.subr.bf16.mxu0 0
    %389 = vmatpush1.bf16.msra.mxu0 %v342
    %390 = vmatprep.subr.bf16.mxu0 0
    %391 = vmatpush1.bf16.msra.mxu0 %v343
    %392 = vmatprep.mubr.bf16.mxu0 %v231
    %393 = vmatmul.mubr.bf16.gmra.mrb[0].mxu0 %v230
    %v394 = vpop.f32.mrb[0].mxu0
    %v395 = vadd.f32 0.0, %v394
    %v396 = vpop.f32.mrb[0].mxu0
    %v397 = vpop.f32.mrb[0].mxu0
    %v398 = vpop.f32.mrb[0].mxu0
    %399 = vdwg.mxu0
    %v400 = vmul.f32 %v395, %v395
    %vm401 = vcmask 1041408
    %v402 = vsel %vm401, %v400, 0.0
    %403 = vadd.xlane.f32.xlu0 %v402
    %v404 = vpop.xlane.xlu0 %403
    %v405 = vrsqrt.pop %v404
    %v406 = vmul.f32 %v404, %v405
    %vm407 = vcmp.eq.f32.partialorder %v404, inf
    %v408 = vsel %vm407, %v404, %v406
    %vm409 = vcmp.eq.f32.partialorder %v404, 0.0
    %v410 = vand.u32 %v404, 2147483648
    %v411 = vsel %vm409, %v410, %v408
    %v412 = vadd.f32 %v411, 1e-10
    %v413 = vrcp.pop %v412
    %v414 = vmul.f32 %v395, %v413
    %v415 = vld [vmem:[%s4] sm:$0x3]
    %v416 = vmul.f32 %v415, %v414
    %v417 = vsel %vm401, %v416, 0.0
    %418 = vadd.xlane.f32.xlu0 %v417
    %v419 = vpop.xlane.xlu0 %418
    %420 = vst [vmem:[%s5] sm:$0x3] %v419
    // Predicated region
    $region26: #{cosine_scoring_forward.1} parent=1 // pred_check
      _
    $region27: #{cosine_scoring_forward.1} parent=1 // pred_check_branch
      %422 = sbr.rel (0) target = $region29
    $region28: #{cosine_scoring_forward.1} parent=1 // pred_region
      _
    $region29: #{cosine_scoring_forward.1} parent=1 // pred_fallthru
      _
    // Predicated region
    $region30: #{cosine_scoring_forward.1} parent=1 // pred_check
      _
    $region31: #{cosine_scoring_forward.1} parent=1 // pred_check_branch
      %424 = sbr.rel (0) target = $region33
    $region32: #{cosine_scoring_forward.1} parent=1 // pred_region
      _
    $region33: #{cosine_scoring_forward.1} parent=1 // pred_fallthru
      _
    %425 = vsyncpa [#allocation3], 1

</llo_original>
